<compile_context>
chip_gen: v7x
topology: tpu7x:2x2x1
jax: 0.10.0
libtpu: 0.0.40
codegen_flags: <defaults>
</compile_context>

<pallas_src>
import functools

import jax
import jax.numpy as jnp
from jax import lax
from jax.experimental import pallas as pl
from jax.experimental.pallas import tpu as pltpu

NEG_SLOPE = 0.1   # nn.LeakyReLU(negative_slope=0.1)
EPS = 1e-5        # nn.BatchNorm2d default eps


# --------------------------------------------------------------------------- kernels
def _bn_train_lrelu_kernel(x_ref, gamma_ref, beta_ref, o_ref, *, eps):
    """Fused BatchNorm (batch statistics) + LeakyReLU.

    x_ref/o_ref : (N, cb, HW)  -- channels on sublanes, spatial on lanes (lane-dense)
    gamma_ref   : (cb, 1)
    beta_ref    : (cb, 1)
    """
    n = x_ref.shape[0] * x_ref.shape[2]
    inv_n = 1.0 / float(n)
    cb = x_ref.shape[1]

    x = x_ref[...].astype(jnp.float32)
    # Single statistics pass: per-channel sum and sum-of-squares, f32 accumulation.
    s = jnp.sum(jnp.sum(x, axis=2, keepdims=True), axis=0, keepdims=True)      # (1,cb,1)
    ss = jnp.sum(jnp.sum(x * x, axis=2, keepdims=True), axis=0, keepdims=True)  # (1,cb,1)
    mean = s * inv_n
    var = jnp.maximum(ss * inv_n - mean * mean, 0.0)   # biased variance (BN training)

    scale = gamma_ref[...].reshape(1, cb, 1) * lax.rsqrt(var + eps)   # rsqrt on EUP
    shift = beta_ref[...].reshape(1, cb, 1) - mean * scale

    y = x * scale + shift
    o_ref[...] = jnp.where(y >= 0, y, NEG_SLOPE * y).astype(o_ref.dtype)


def _bn_eval_lrelu_kernel(x_ref, scale_ref, shift_ref, o_ref):
    """Fused BatchNorm (stats pre-folded into scale/shift) + LeakyReLU.

    x_ref/o_ref : (N, cb, tw); scale_ref/shift_ref : (cb, 1)
    """
    cb = x_ref.shape[1]
    scale = scale_ref[...].reshape(1, cb, 1)
    shift = shift_ref[...].reshape(1, cb, 1)
    y = x_ref[...].astype(jnp.float32) * scale + shift
    o_ref[...] = jnp.where(y >= 0, y, NEG_SLOPE * y).astype(o_ref.dtype)


# --------------------------------------------------------------------------- sizing
def _vmem_capacity_bytes():
    try:
        cap = int(pltpu.get_tpu_info().vmem_capacity_bytes)
        if cap > 0:
            return cap
    except Exception:
        pass
    return 64 << 20   # conservative fallback: v7x per-TensorCore VMEM


def _channel_block_candidates(C):
    """Legal channel block sizes: divisors of C that are multiples of 8, plus C itself
    (full-extent second-to-last dim is always legal). Descending."""
    cands = [d for d in range(8, C, 8) if C % d == 0]
    cands.append(C)
    return sorted(set(cands), reverse=True)


def _spatial_tile_candidates(HW):
    """Legal lane tiles: HW itself (full extent) and multiples of 128 dividing HW."""
    cands = [HW] + [t for t in range(128, HW, 128) if HW % t == 0]
    return sorted(set(cands), reverse=True)


def _pick_train_cb(C, per_channel_bytes, budget, prefer_split):
    fitting = [c for c in _channel_block_candidates(C) if c * per_channel_bytes <= budget]
    if not fitting:
        return None
    if prefer_split:
        split = [c for c in fitting if c <= C // 2]
        if split:
            return max(split)       # guarantee >= 2 grid steps for v7x's 2 TCs
    return max(fitting)


def _pick_eval_tiles(N, C, HW, per_elem_bytes, budget):
    cb_cands = _channel_block_candidates(C)
    tw_cands = _spatial_tile_candidates(HW)
    for cb in cb_cands:
        for tw in tw_cands:
            if N * cb * tw * per_elem_bytes <= budget:
                # If the whole problem fits in one step, still split the spatial axis
                # in two so v7x's second TensorCore gets work.
                if (C // cb) * (HW // tw) == 1 and HW % 256 == 0:
                    tw = HW // 2
                return cb, tw
    return cb_cands[-1], tw_cands[-1]   # last resort: smallest legal tiles


# --------------------------------------------------------------------------- wrapper
def avg_pooling_pallas(x, gamma, beta, running_mean, running_var,
                       *, eps=EPS, training=True):
    """Forward of the AvgPooling module. Input/output NCHW (no relayouts)."""
    N, C, H, W = x.shape
    HW = H * W

    # AvgPool2d((1,1)) == identity. Merge trailing dims only (free, contiguous).
    x3 = x.reshape(N, C, HW)

    in_b = jnp.dtype(x.dtype).itemsize
    out_b = in_b
    cap = _vmem_capacity_bytes()
    budget = min(cap // 2, 48 << 20)                     # per-step working-set budget
    vmem_limit = int(min(cap * 4 // 5, max(budget + (8 << 20), 32 << 20)))
    params = pltpu.CompilerParams  # alias for brevity below

    if training:
        # Double-buffered I/O + in-kernel f32 working set (x cast, x*x, y), per channel.
        per_channel = N * HW * (2 * (in_b + out_b) + 16)
        cb = _pick_train_cb(C, per_channel, budget, prefer_split=(C >= 16))
        if cb is not None:
            out = pl.pallas_call(
                functools.partial(_bn_train_lrelu_kernel, eps=float(eps)),
                out_shape=jax.ShapeDtypeStruct((N, C, HW), x.dtype),
                grid_spec=pltpu.PrefetchScalarGridSpec(
                    num_scalar_prefetch=0,
                    grid=(C // cb,),
                    in_specs=[
                        pl.BlockSpec((N, cb, HW), lambda i: (0, i, 0)),
                        pl.BlockSpec((cb, 1), lambda i: (i, 0)),
                        pl.BlockSpec((cb, 1), lambda i: (i, 0)),
                    ],
                    out_specs=pl.BlockSpec((N, cb, HW), lambda i: (0, i, 0)),
                ),
                compiler_params=params(
                    dimension_semantics=("parallel",),
                    vmem_limit_bytes=vmem_limit),
            )(x3,
              gamma.astype(jnp.float32).reshape(C, 1),
              beta.astype(jnp.float32).reshape(C, 1))
            return out.reshape(N, C, H, W)

        # Fallback (huge N*H*W, e.g. on v7x's 64 MiB VMEM): one XLA reduction pass for
        # the batch statistics, then the fused normalize+LeakyReLU kernel below.
        xf = x3.astype(jnp.float32)
        mean = jnp.mean(xf, axis=(0, 2))
        var = jnp.maximum(jnp.mean(jnp.square(xf), axis=(0, 2)) - mean * mean, 0.0)
    else:
        mean = running_mean.astype(jnp.float32)
        var = running_var.astype(jnp.float32)

    # Fold BN into per-channel scale/shift (tiny (C,)-sized XLA computation).
    scale = gamma.astype(jnp.float32) * lax.rsqrt(var + eps)
    shift = beta.astype(jnp.float32) - mean * scale

    per_elem = 2 * (in_b + out_b) + 8     # double-buffered I/O + f32 y
    cb, tw = _pick_eval_tiles(N, C, HW, per_elem, budget)

    out = pl.pallas_call(
        _bn_eval_lrelu_kernel,
        out_shape=jax.ShapeDtypeStruct((N, C, HW), x.dtype),
        grid_spec=pltpu.PrefetchScalarGridSpec(
            num_scalar_prefetch=0,
            grid=(C // cb, HW // tw),
            in_specs=[
                pl.BlockSpec((N, cb, tw), lambda i, j: (0, i, j)),
                pl.BlockSpec((cb, 1), lambda i, j: (i, 0)),   # constant over inner j
                pl.BlockSpec((cb, 1), lambda i, j: (i, 0)),
            ],
            out_specs=pl.BlockSpec((N, cb, tw), lambda i, j: (0, i, j)),
        ),
        compiler_params=params(
            dimension_semantics=("parallel", "parallel"),
            vmem_limit_bytes=vmem_limit),
    )(x3, scale.reshape(C, 1), shift.reshape(C, 1))

    return out.reshape(N, C, H, W)


# ---- pure-JAX reference (mirrors the PyTorch forward) ------------------------
def avg_pooling_ref(x, gamma, beta, running_mean, running_var, *, eps=EPS, training=True):
    # AvgPool2d((1,1)) is the identity.
    if training:
        mean = jnp.mean(x, axis=(0, 2, 3))
        var = jnp.mean((x - mean[None, :, None, None]) ** 2, axis=(0, 2, 3))
    else:
        mean, var = running_mean, running_var
    y = (x - mean[None, :, None, None]) * lax.rsqrt(var[None, :, None, None] + eps)
    y = y * gamma[None, :, None, None] + beta[None, :, None, None]
    return jnp.where(y >= 0, y, NEG_SLOPE * y)


if __name__ == "__main__":
    # Small shapes consistent with the module: N=2, num_feature=C=4, H=W=16.
    N, C, H, W = 2, 4, 16, 16

    key = jax.random.PRNGKey(0)
    kx, kg, kb, km, kv = jax.random.split(key, 5)

    x = jax.random.normal(kx, (N, C, H, W), dtype=jnp.float32)
    gamma = 1.0 + 0.1 * jax.random.normal(kg, (C,), dtype=jnp.float32)
    beta = 0.1 * jax.random.normal(kb, (C,), dtype=jnp.float32)
    running_mean = 0.1 * jax.random.normal(km, (C,), dtype=jnp.float32)
    running_var = 1.0 + 0.5 * jax.random.uniform(kv, (C,), dtype=jnp.float32)

    # Training-mode forward (default mode of a freshly-constructed module: batch stats).
    out_tr = jax.block_until_ready(
        avg_pooling_pallas(x, gamma, beta, running_mean, running_var, training=True))
    ref_tr = avg_pooling_ref(x, gamma, beta, running_mean, running_var, training=True)
    assert out_tr.shape == (N, C, H, W)
    assert jnp.allclose(out_tr, ref_tr, atol=1e-4, rtol=1e-4), \
        float(jnp.abs(out_tr - ref_tr).max())

    # Eval-mode forward (running statistics).
    out_ev = jax.block_until_ready(
        avg_pooling_pallas(x, gamma, beta, running_mean, running_var, training=False))
    ref_ev = avg_pooling_ref(x, gamma, beta, running_mean, running_var, training=False)
    assert jnp.allclose(out_ev, ref_ev, atol=1e-4, rtol=1e-4), \
        float(jnp.abs(out_ev - ref_ev).max())

    print("KERNEL_OK")
</pallas_src>

<mosaic_0001>
module attributes {stable_mosaic.version = 11 : i64} {
  func.func @_bn_train_lrelu_kernel(%arg0: i32, %arg1: memref<2x4x256xf32, #tpu.memory_space<vmem>>, %arg2: memref<4x1xf32, #tpu.memory_space<vmem>>, %arg3: memref<4x1xf32, #tpu.memory_space<vmem>>, %arg4: memref<2x4x256xf32, #tpu.memory_space<vmem>>) attributes {dimension_semantics = [#tpu.dimension_semantics<parallel>], iteration_bounds = array<i64: 1>, scalar_prefetch = 0 : i64, scratch_operands = 0 : i64, tpu.core_type = #tpu.core_type<tc>, window_params = [{transform_indices = @transform_0, window_bounds = array<i64: 2, 4, 256>}, {transform_indices = @transform_1, window_bounds = array<i64: 4, 1>}, {transform_indices = @transform_2, window_bounds = array<i64: 4, 1>}, {transform_indices = @transform_3, window_bounds = array<i64: 2, 4, 256>}]} {
    %c0 = arith.constant 0 : index
    %c0_0 = arith.constant 0 : index
    %c0_1 = arith.constant 0 : index
    %0 = vector.load %arg1[%c0, %c0_0, %c0_1] : memref<2x4x256xf32, #tpu.memory_space<vmem>>, vector<2x4x256xf32>
    %cst = arith.constant dense<0.000000e+00> : vector<2x4xf32>
    %1 = vector.multi_reduction <add>, %0, %cst [2] : vector<2x4x256xf32> to vector<2x4xf32>
    %2 = vector.shape_cast %1 : vector<2x4xf32> to vector<2x4x1xf32>
    %cst_2 = arith.constant dense<0.000000e+00> : vector<4x1xf32>
    %3 = vector.multi_reduction <add>, %2, %cst_2 [0] : vector<2x4x1xf32> to vector<4x1xf32>
    %4 = vector.shape_cast %3 : vector<4x1xf32> to vector<1x4x1xf32>
    %5 = arith.mulf %0, %0 : vector<2x4x256xf32>
    %cst_3 = arith.constant dense<0.000000e+00> : vector<2x4xf32>
    %6 = vector.multi_reduction <add>, %5, %cst_3 [2] : vector<2x4x256xf32> to vector<2x4xf32>
    %7 = vector.shape_cast %6 : vector<2x4xf32> to vector<2x4x1xf32>
    %cst_4 = arith.constant dense<0.000000e+00> : vector<4x1xf32>
    %8 = vector.multi_reduction <add>, %7, %cst_4 [0] : vector<2x4x1xf32> to vector<4x1xf32>
    %9 = vector.shape_cast %8 : vector<4x1xf32> to vector<1x4x1xf32>
    %cst_5 = arith.constant 0.001953125 : f32
    %10 = vector.broadcast %cst_5 : f32 to vector<1x4x1xf32>
    %11 = arith.mulf %4, %10 : vector<1x4x1xf32>
    %cst_6 = arith.constant 0.001953125 : f32
    %12 = vector.broadcast %cst_6 : f32 to vector<1x4x1xf32>
    %13 = arith.mulf %9, %12 : vector<1x4x1xf32>
    %14 = arith.mulf %11, %11 : vector<1x4x1xf32>
    %15 = arith.subf %13, %14 : vector<1x4x1xf32>
    %cst_7 = arith.constant 0.000000e+00 : f32
    %16 = vector.broadcast %cst_7 : f32 to vector<1x4x1xf32>
    %17 = arith.maximumf %15, %16 : vector<1x4x1xf32>
    %c0_8 = arith.constant 0 : index
    %c0_9 = arith.constant 0 : index
    %18 = vector.load %arg2[%c0_8, %c0_9] : memref<4x1xf32, #tpu.memory_space<vmem>>, vector<4x1xf32>
    %19 = vector.shape_cast %18 : vector<4x1xf32> to vector<1x4x1xf32>
    %cst_10 = arith.constant 9.99999974E-6 : f32
    %20 = vector.broadcast %cst_10 : f32 to vector<1x4x1xf32>
    %21 = arith.addf %17, %20 : vector<1x4x1xf32>
    %22 = math.rsqrt %21 : vector<1x4x1xf32>
    %23 = arith.mulf %19, %22 : vector<1x4x1xf32>
    %c0_11 = arith.constant 0 : index
    %c0_12 = arith.constant 0 : index
    %24 = vector.load %arg3[%c0_11, %c0_12] : memref<4x1xf32, #tpu.memory_space<vmem>>, vector<4x1xf32>
    %25 = vector.shape_cast %24 : vector<4x1xf32> to vector<1x4x1xf32>
    %26 = arith.mulf %11, %23 : vector<1x4x1xf32>
    %27 = arith.subf %25, %26 : vector<1x4x1xf32>
    %28 = vector.broadcast %23 : vector<1x4x1xf32> to vector<2x4x256xf32>
    %29 = arith.mulf %0, %28 : vector<2x4x256xf32>
    %30 = vector.broadcast %27 : vector<1x4x1xf32> to vector<2x4x256xf32>
    %31 = arith.addf %29, %30 : vector<2x4x256xf32>
    %cst_13 = arith.constant 0.000000e+00 : f32
    %32 = vector.broadcast %cst_13 : f32 to vector<2x4x256xf32>
    %33 = arith.cmpf oge, %31, %32 : vector<2x4x256xf32>
    %cst_14 = arith.constant 1.000000e-01 : f32
    %34 = vector.broadcast %cst_14 : f32 to vector<2x4x256xf32>
    %35 = arith.mulf %34, %31 : vector<2x4x256xf32>
    %36 = arith.select %33, %31, %35 : vector<2x4x256xi1>, vector<2x4x256xf32>
    %c0_15 = arith.constant 0 : index
    %c0_16 = arith.constant 0 : index
    %c0_17 = arith.constant 0 : index
    %37 = vector.load %arg4[%c0_15, %c0_16, %c0_17] : memref<2x4x256xf32, #tpu.memory_space<vmem>>, vector<2x4x256xf32>
    tpu.vector_store %arg4[%c0_15, %c0_16, %c0_17], %36 {strides = array<i32>} : memref<2x4x256xf32, #tpu.memory_space<vmem>>, vector<2x4x256xf32>,
    return
  }
  func.func @transform_0(%arg0: i32) -> (i32, i32, i32) {
    %c0_i32 = arith.constant 0 : i32
    %c0_i32_0 = arith.constant 0 : i32
    %c0_i32_1 = arith.constant 0 : i32
    return %c0_i32, %arg0, %c0_i32_0 : i32, i32, i32
  }
  func.func @transform_1(%arg0: i32) -> (i32, i32) {
    %c0_i32 = arith.constant 0 : i32
    %c0_i32_0 = arith.constant 0 : i32
    return %arg0, %c0_i32 : i32, i32
  }
  func.func @transform_2(%arg0: i32) -> (i32, i32) {
    %c0_i32 = arith.constant 0 : i32
    %c0_i32_0 = arith.constant 0 : i32
    return %arg0, %c0_i32 : i32, i32
  }
  func.func @transform_3(%arg0: i32) -> (i32, i32, i32) {
    %c0_i32 = arith.constant 0 : i32
    %c0_i32_0 = arith.constant 0 : i32
    %c0_i32_1 = arith.constant 0 : i32
    return %c0_i32, %arg0, %c0_i32_0 : i32, i32, i32
  }
}

</mosaic_0001>

<llo_original>
// kernel: tpu_custom_call.1
$region0: #{tpu_custom_call.1}
  #allocation0 [shape = 'u32[]', space=smem, size = 0x4, offset = 0x4, fixed_abs, tag = 'smem constant byte address 0x4 - core index']
  #allocation1 [shape = 'u32[144,128]{1,0:T(1,128)}', space=vmem, size = 0x12000, scoped, tag = 'internal scratch']
  %s0 = inlined_call_operand.hbm [shape: f32[2,4,256], index: 0, kind: input, shape index: {}]
  %s1 = inlined_call_operand.vmem [shape: f32[4,1], index: 1, kind: input, shape index: {}]
  %s2 = inlined_call_operand.vmem [shape: f32[4,1], index: 2, kind: input, shape index: {}]
  %s3 = inlined_call_operand.hbm [shape: f32[2,4,256], index: 3, kind: output, shape index: {}]
  %s4 = sld [smem:[#allocation0]]
  $region26: #{tpu_custom_call.1} parent=0
    _
  %s6 = ssub.s32 1, %s4
  %s7 = scalar_select 0, %s6, %s4
  $region1: #{tpu_custom_call.1} parent=0
    #allocation2 [shape = 'u8[8192]{0}', space=vmem, size = 0x2000, scoped, tag = 'input window, operand 0, single buffered']
    #allocation3 [shape = 's32[1]{0}', space=sflag, size = 0x4, scoped, tag = 'scoped memory for tpu_custom_call.1']
    #allocation4 [shape = 's32[1]{0}', space=sflag, size = 0x4, scoped, tag = 'scoped memory for tpu_custom_call.1']
    #allocation5 [shape = 'u8[8192]{0}', space=vmem, size = 0x2000, scoped, tag = 'output window, operand 0, single buffered']
    %8 = vsyncpa [#allocation3], 0
    %9 = vsyncpa [#allocation4], 0
    // Predicated region
    $region2: #{tpu_custom_call.1} parent=1 // pred_check
      _
    $region3: #{tpu_custom_call.1} parent=1 // pred_check_branch
      %11 = sbr.rel (0) target = $region5
    $region4: #{tpu_custom_call.1} parent=1 // pred_region
      %s13 = ssub.s32 256, 256
      %14 = vsyncadd [#allocation3], %s13
      %s15 = sshll.u32 [#allocation2], 4
      %s16 = int_to_ptr.vmem [resolvable:$true] %s15
      %21 = dma.hbm_to_vmem [thread:$0]  %s0, 256, %s16, [#allocation3], 128, 128, 8
    $region5: #{tpu_custom_call.1} parent=1 // pred_fallthru
      _
    // Predicated region
    $region6: #{tpu_custom_call.1} parent=1 // pred_check
      _
    $region7: #{tpu_custom_call.1} parent=1 // pred_check_branch
      %23 = sbr.rel (0) target = $region9
    $region8: #{tpu_custom_call.1} parent=1 // pred_region
      _
    $region9: #{tpu_custom_call.1} parent=1 // pred_fallthru
      _
    // Predicated region
    $region10: #{tpu_custom_call.1} parent=1 // pred_check
      _
    $region11: #{tpu_custom_call.1} parent=1 // pred_check_branch
      %25 = sbr.rel (0) target = $region13
    $region12: #{tpu_custom_call.1} parent=1 // pred_region
      _
    $region13: #{tpu_custom_call.1} parent=1 // pred_fallthru
      _
    // Predicated region
    $region14: #{tpu_custom_call.1} parent=1 // pred_check
      _
    $region15: #{tpu_custom_call.1} parent=1 // pred_check_branch
      %27 = sbr.rel (0) target = $region17
    $region16: #{tpu_custom_call.1} parent=1 // pred_region
      %28 = dma.done [#allocation3], 256
    $region17: #{tpu_custom_call.1} parent=1 // pred_fallthru
      _
    %v29 = vld [vmem:[#allocation2] sm:$0xff]
    %v30 = vld [vmem:[#allocation2 + $0x8] sm:$0xff]
    %v33 = vcombine.high %v29, %v29
    %v34 = vcombine.high %v30, %v30
    %vm37 = vcmask 1043456
    %v38 = vsel %vm37, %v29, 0.0
    %v39 = vsel %vm37, %v33, 0.0
    %v40 = vadd.f32 %v38, %v39
    %41 = vadd.xlane.f32.xlu0 %v40
    %v42 = vpop.xlane.xlu0 %41
    %v43 = vsel %vm37, %v30, 0.0
    %v44 = vsel %vm37, %v34, 0.0
    %v45 = vadd.f32 %v43, %v44
    %46 = vadd.xlane.f32.xlu0 %v45
    %v47 = vpop.xlane.xlu0 %46
    %v48 = vsel %vm37, %v42, 0.0
    %v49 = vsel %vm37, %v47, 0.0
    %v50 = vadd.f32 %v48, %v49
    %v51 = vmul.f32 %v29, %v29
    %v52 = vmul.f32 %v30, %v30
    %v55 = vcombine.high %v51, %v51
    %v56 = vcombine.high %v52, %v52
    %v59 = vsel %vm37, %v51, 0.0
    %v60 = vsel %vm37, %v55, 0.0
    %v61 = vadd.f32 %v59, %v60
    %62 = vadd.xlane.f32.xlu0 %v61
    %v63 = vpop.xlane.xlu0 %62
    %v64 = vsel %vm37, %v52, 0.0
    %v65 = vsel %vm37, %v56, 0.0
    %v66 = vadd.f32 %v64, %v65
    %67 = vadd.xlane.f32.xlu0 %v66
    %v68 = vpop.xlane.xlu0 %67
    %v69 = vsel %vm37, %v63, 0.0
    %v70 = vsel %vm37, %v68, 0.0
    %v71 = vadd.f32 %v69, %v70
    %v72 = vmul.f32 %v50, 0.001953125
    %v73 = vmul.f32 %v71, 0.001953125
    %v74 = vmul.f32 %v72, %v72
    %v75 = vsub.f32 %v73, %v74
    %v76 = vmax.f32 %v75, 0.0
    %v77 = vld [vmem:[%s1] sm:$0xf]
    %v78 = vadd.f32 %v76, 1e-05
    %v79 = vrsqrt.pop %v78
    %v80 = vmul.f32 %v77, %v79
    %v81 = vld [vmem:[%s2] sm:$0xf]
    %v82 = vmul.f32 %v72, %v80
    %v83 = vsub.f32 %v81, %v82
    %85 = vset.pattern.permute.xlu0 0
    %86 = vperm.xlu0 %85, %v80
    %v87 = vpop.permute.xlu0 %86
    %v89 = vunpack.c.l.s4 839922192
    %v90 = vunpack.c.0.s8 %v89
    %v91 = vlaneseq
    %v92 = vshrl.u32 %v91, 7
    %v93 = vsub.s32 %v90, %v92
    %v94 = vrot.slane %v87, %v93
    %v96 = vmul.f32 %v29, %v94
    %v97 = vmul.f32 %v30, %v94
    %99 = vset.pattern.permute.xlu0 0
    %100 = vperm.xlu0 %99, %v83
    %v101 = vpop.permute.xlu0 %100
    %v103 = vunpack.c.l.s4 839922192
    %v104 = vunpack.c.0.s8 %v103
    %v105 = vlaneseq
    %v106 = vshrl.u32 %v105, 7
    %v107 = vsub.s32 %v104, %v106
    %v108 = vrot.slane %v101, %v107
    %v110 = vadd.f32 %v96, %v108
    %v111 = vadd.f32 %v97, %v108
    %vm112 = vcmp.ge.f32.partialorder %v110, 0.0
    %vm113 = vcmp.ge.f32.partialorder %v111, 0.0
    %v114 = vmul.f32 %v110, 0.1
    %v115 = vmul.f32 %v111, 0.1
    %v116 = vsel %vm112, %v110, %v114
    %v117 = vsel %vm113, %v111, %v115
    %118 = vst [vmem:[#allocation5] sm:$0xff] %v116
    %119 = vst [vmem:[#allocation5 + $0x8] sm:$0xff] %v117
    // Predicated region
    $region18: #{tpu_custom_call.1} parent=1 // pred_check
      _
    $region19: #{tpu_custom_call.1} parent=1 // pred_check_branch
      %121 = sbr.rel (0) target = $region21
    $region20: #{tpu_custom_call.1} parent=1 // pred_region
      %s123 = ssub.s32 256, 256
      %124 = vsyncadd [#allocation4], %s123
      %s125 = sshll.u32 [#allocation5], 4
      %s126 = int_to_ptr.vmem [resolvable:$true] %s125
      %131 = dma.vmem_to_hbm [thread:$0]  %s126, 256, %s3, [#allocation4], 128, 128, 8
    $region21: #{tpu_custom_call.1} parent=1 // pred_fallthru
      _
    // Predicated region
    $region22: #{tpu_custom_call.1} parent=1 // pred_check
      _
    $region23: #{tpu_custom_call.1} parent=1 // pred_check_branch
      %133 = sbr.rel (0) target = $region25
    $region24: #{tpu_custom_call.1} parent=1 // pred_region
      %134 = dma.done [#allocation4], 256
    $region25: #{tpu_custom_call.1} parent=1 // pred_fallthru
      _
    %135 = vsyncpa [#allocation3], 1
    %136 = vsyncpa [#allocation4], 1

</llo_original>
